<compile_context>
chip_gen: v7x
topology: tpu7x:2x2x1
jax: 0.10.0
libtpu: 0.0.40
codegen_flags: <defaults>
</compile_context>

<pallas_src>
import functools

import numpy as np
import jax
import jax.numpy as jnp
from jax.experimental import pallas as pl
from jax.experimental.pallas import tpu as pltpu


# ------------------------------------------------------------------ kernel --
def temporal_encoding_kernel(t_ref, const_ref, out_ref):
    t = t_ref[...]                       # (tile_n, 1)  f32, row tile
    c = const_ref[...]                   # (2, d_out)   f32, resident
    div = c[0:1, :]                      # 1/10000^(2*(j//2)/d_hid), 0-padded
    phase = c[1:2, :]                    # 0 for even cols, pi/2 for odd cols
    # Outer product (t @ div) is a broadcasted multiply; one sin per element
    # (cos(x) == sin(x + pi/2)).  Padding columns have div=phase=0 -> sin(0)=0.
    out_ref[...] = jnp.sin(t * div + phase).astype(out_ref.dtype)


# ------------------------------------------------------------- host helpers --
def _round_up(x: int, m: int) -> int:
    return ((x + m - 1) // m) * m


@functools.lru_cache(maxsize=None)
def _const_np(d_hid: int, d_out: int):
    """Fused (2, d_out) constant: row 0 = div_term, row 1 = phase (0 / pi/2),
    zero-padded on the lane axis beyond d_hid."""
    j = np.arange(d_hid)
    div = (1.0 / np.power(10000.0, 2.0 * (j // 2) / d_hid)).astype(np.float32)
    phase = np.where(j % 2 == 0, 0.0, np.pi / 2.0).astype(np.float32)
    c = np.zeros((2, d_out), np.float32)
    c[0, :d_hid] = div
    c[1, :d_hid] = phase
    return c


@functools.lru_cache(maxsize=None)
def _vmem_budget_bytes() -> int:
    """Generation-aware scoped-VMEM request (v7x: 64 MiB physical, v5e/v6e:
    128 MiB).  Conservative fallback if the query is unavailable."""
    cap = 64 * 1024 * 1024  # assume the smallest (v7x) if we cannot query
    try:
        info = pltpu.get_tpu_info()
        for attr in ("vmem_capacity_bytes", "vmem_bytes"):
            v = getattr(info, attr, None)
            if v:
                cap = int(v)
                break
    except Exception:
        pass
    # Use ~60% of physical VMEM, capped at 80 MiB, floored at 16 MiB.
    return max(16 << 20, min((cap * 3) // 5, 80 << 20))


_MAX_TILE_N = 16384  # rows; 16384 x 128 f32 = 8 MiB output tile per buffer


def _choose_tile_n(n: int, d_out: int, tile_budget_bytes: int) -> int:
    # Per row, per buffer: output row (d_out*4 B) + the lane-padded t row.
    # A (tile_n, 1) f32 block occupies tile_n/8 vregs => 512 B per row in
    # VMEM, not 4 B.  Factor 2 for Pallas double buffering of both operands.
    bytes_per_row = 2 * (d_out * 4 + 512)
    rows = max(8, (tile_budget_bytes // bytes_per_row) // 8 * 8)
    n8 = _round_up(max(n, 1), 8)
    return int(min(rows, _MAX_TILE_N, n8))


# ----------------------------------------------------------------- wrapper --
@functools.partial(jax.jit, static_argnames=("d_hid", "out_dtype"))
def temporal_encoding(t: jnp.ndarray, d_hid: int, out_dtype=jnp.float32) -> jnp.ndarray:
    """t: any shape with n total elements (PyTorch does t.view(-1, 1)).
    Returns [n, d_hid] encoding matching TemporalEncoding.forward.
    out_dtype=jnp.bfloat16 is an optional deviation for write-bound chips."""
    t = t.reshape(-1, 1).astype(jnp.float32)   # flatten like .view(-1, 1)
    n = t.shape[0]

    # Lane-dense output width.  If d_hid is already a multiple of 128 we emit
    # the exact result (no pad, no post-kernel slice copy); otherwise pad the
    # hidden dim to 128 lanes and slice the extra columns off afterwards.
    d_out = _round_up(max(d_hid, 128), 128)
    needs_col_slice = d_out != d_hid

    const = jnp.asarray(_const_np(d_hid, d_out))

    vmem_budget = _vmem_budget_bytes()
    tile_budget = vmem_budget - (4 << 20)        # headroom: constants + scratch
    tile_n = _choose_tile_n(n, d_out, tile_budget)
    grid = (pl.cdiv(n, tile_n),)                 # ragged last block is masked

    out_itemsize = np.dtype(out_dtype).itemsize

    out = pl.pallas_call(
        temporal_encoding_kernel,
        out_shape=jax.ShapeDtypeStruct((n, d_out), out_dtype),
        grid=grid,
        in_specs=[
            pl.BlockSpec((tile_n, 1), lambda i: (i, 0)),     # t rows, tiled
            pl.BlockSpec((2, d_out), lambda i: (0, 0)),      # div/phase, resident
        ],
        out_specs=pl.BlockSpec((tile_n, d_out), lambda i: (i, 0)),
        compiler_params=pltpu.CompilerParams(
            # TODO(synk): verify on v7x that both TensorCores pick up row
            # tiles; if not, switch to CORE_PARALLEL / an explicit core axis.
            dimension_semantics=("parallel",),
            vmem_limit_bytes=int(vmem_budget),
        ),
        cost_estimate=pl.CostEstimate(
            flops=2 * n * d_out,                              # mul + add / elem
            transcendentals=n * d_out,                        # one sin / elem
            bytes_accessed=n * d_out * out_itemsize + 4 * (n + 2 * d_out),
        ),
    )(t, const)

    if needs_col_slice:
        out = out[:, :d_hid]
    return out


# --------------------------------------------------------------- reference --
def temporal_encoding_ref(t: jnp.ndarray, d_hid: int) -> jnp.ndarray:
    """Pure-JAX reference mirroring the PyTorch forward exactly."""
    t = t.reshape(-1, 1).astype(jnp.float32)
    j = np.arange(d_hid)
    div = jnp.asarray(
        (1.0 / np.power(10000.0, 2.0 * (j // 2) / d_hid)).astype(np.float32)
    ).reshape(1, d_hid)
    pos = t @ div
    col = jnp.arange(d_hid)[None, :]
    return jnp.where((col % 2) == 0, jnp.sin(pos), jnp.cos(pos))


# -------------------------------------------------------------------- main --
if __name__ == "__main__":
    key = jax.random.PRNGKey(0)
    key_a, key_b = jax.random.split(key)

    # Small shape consistent with the module: timestamps [n, 1], d_hid=32.
    n, d_hid = 8, 32
    t = jax.random.uniform(key_a, (n, 1), dtype=jnp.float32, minval=0.0, maxval=100.0)

    out = jax.block_until_ready(temporal_encoding(t, d_hid))
    ref = temporal_encoding_ref(t, d_hid)
    np.testing.assert_allclose(np.asarray(out), np.asarray(ref), rtol=1e-5, atol=1e-5)
    assert out.shape == (n, d_hid), out.shape

    # Also exercise the lane-aligned fast path (d_hid % 128 == 0: no pad, no
    # post-kernel slice) and a ragged row count (n not a multiple of 8).
    n2, d2 = 10, 256
    t2 = jax.random.uniform(key_b, (n2, 1), dtype=jnp.float32, minval=0.0, maxval=50.0)
    out2 = jax.block_until_ready(temporal_encoding(t2, d2))
    ref2 = temporal_encoding_ref(t2, d2)
    np.testing.assert_allclose(np.asarray(out2), np.asarray(ref2), rtol=1e-5, atol=1e-5)
    assert out2.shape == (n2, d2), out2.shape

    print("KERNEL_OK")
</pallas_src>

<mosaic_0001>
module attributes {stable_mosaic.version = 11 : i64} {
  func.func @temporal_encoding_kernel(%arg0: i32, %arg1: memref<8x1xf32, #tpu.memory_space<vmem>>, %arg2: memref<2x128xf32, #tpu.memory_space<vmem>>, %arg3: memref<8x128xf32, #tpu.memory_space<vmem>>) attributes {dimension_semantics = [#tpu.dimension_semantics<parallel>], iteration_bounds = array<i64: 1>, scalar_prefetch = 0 : i64, scratch_operands = 0 : i64, tpu.core_type = #tpu.core_type<tc>, window_params = [{transform_indices = @transform_0, window_bounds = array<i64: 8, 1>}, {pipeline_mode = #tpu.pipeline_mode<synchronous>, transform_indices = @transform_1, window_bounds = array<i64: 2, 128>}, {transform_indices = @transform_2, window_bounds = array<i64: 8, 128>}]} {
    %c0 = arith.constant 0 : index
    %c0_0 = arith.constant 0 : index
    %0 = vector.load %arg1[%c0, %c0_0] : memref<8x1xf32, #tpu.memory_space<vmem>>, vector<8x1xf32>
    %c0_1 = arith.constant 0 : index
    %c0_2 = arith.constant 0 : index
    %1 = vector.load %arg2[%c0_1, %c0_2] : memref<2x128xf32, #tpu.memory_space<vmem>>, vector<2x128xf32>
    %2 = vector.extract_strided_slice %1 {offsets = [0, 0], sizes = [1, 128], strides = [1, 1]} : vector<2x128xf32> to vector<1x128xf32>
    %3 = vector.extract_strided_slice %1 {offsets = [1, 0], sizes = [1, 128], strides = [1, 1]} : vector<2x128xf32> to vector<1x128xf32>
    %4 = vector.broadcast %0 : vector<8x1xf32> to vector<8x128xf32>
    %5 = vector.broadcast %2 : vector<1x128xf32> to vector<8x128xf32>
    %6 = arith.mulf %4, %5 : vector<8x128xf32>
    %7 = vector.broadcast %3 : vector<1x128xf32> to vector<8x128xf32>
    %8 = arith.addf %6, %7 : vector<8x128xf32>
    %9 = math.sin %8 : vector<8x128xf32>
    %c0_3 = arith.constant 0 : index
    %c0_4 = arith.constant 0 : index
    %10 = vector.load %arg3[%c0_3, %c0_4] : memref<8x128xf32, #tpu.memory_space<vmem>>, vector<8x128xf32>
    tpu.vector_store %arg3[%c0_3, %c0_4], %9 {strides = array<i32>} : memref<8x128xf32, #tpu.memory_space<vmem>>, vector<8x128xf32>,
    return
  }
  func.func @transform_0(%arg0: i32) -> (i32, i32) {
    %c0_i32 = arith.constant 0 : i32
    %c0_i32_0 = arith.constant 0 : i32
    return %arg0, %c0_i32 : i32, i32
  }
  func.func @transform_1(%arg0: i32) -> (i32, i32) {
    %c0_i32 = arith.constant 0 : i32
    %c0_i32_0 = arith.constant 0 : i32
    %c0_i32_1 = arith.constant 0 : i32
    return %c0_i32, %c0_i32_0 : i32, i32
  }
  func.func @transform_2(%arg0: i32) -> (i32, i32) {
    %c0_i32 = arith.constant 0 : i32
    %c0_i32_0 = arith.constant 0 : i32
    return %arg0, %c0_i32 : i32, i32
  }
}

</mosaic_0001>

<llo_original>
// kernel: temporal_encoding.1
$region0: #{temporal_encoding.1}
  #allocation0 [shape = 'u32[]', space=smem, size = 0x4, offset = 0x4, fixed_abs, tag = 'smem constant byte address 0x4 - core index']
  #allocation1 [shape = 'u32[144,128]{1,0:T(1,128)}', space=vmem, size = 0x12000, scoped, tag = 'internal scratch']
  %s0 = inlined_call_operand.vmem [shape: f32[8,1], index: 0, kind: input, shape index: {}]
  %s1 = inlined_call_operand.vmem [shape: f32[2,128], index: 1, kind: input, shape index: {}]
  %s2 = inlined_call_operand.hbm [shape: f32[8,128], index: 2, kind: output, shape index: {}]
  %s3 = sld [smem:[#allocation0]]
  $region18: #{temporal_encoding.1} parent=0
    _
  %s5 = ssub.s32 1, %s3
  %s6 = scalar_select 0, %s5, %s3
  $region1: #{temporal_encoding.1} parent=0
    #allocation2 [shape = 'u8[4096]{0}', space=vmem, size = 0x1000, scoped, tag = 'output window, operand 0, single buffered']
    #allocation3 [shape = 's32[1]{0}', space=sflag, size = 0x4, scoped, tag = 'scoped memory for temporal_encoding.1']
    %7 = vsyncpa [#allocation3], 0
    // Predicated region
    $region2: #{temporal_encoding.1} parent=1 // pred_check
      _
    $region3: #{temporal_encoding.1} parent=1 // pred_check_branch
      %9 = sbr.rel (0) target = $region5
    $region4: #{temporal_encoding.1} parent=1 // pred_region
      _
    $region5: #{temporal_encoding.1} parent=1 // pred_fallthru
      _
    // Predicated region
    $region6: #{temporal_encoding.1} parent=1 // pred_check
      _
    $region7: #{temporal_encoding.1} parent=1 // pred_check_branch
      %11 = sbr.rel (0) target = $region9
    $region8: #{temporal_encoding.1} parent=1 // pred_region
      _
    $region9: #{temporal_encoding.1} parent=1 // pred_fallthru
      _
    %v12 = vld [vmem:[%s0] sm:$0xff]
    %v13 = vld [vmem:[%s1] sm:$0x3]
    %15 = vset.pattern.permute.xlu0 0
    %16 = vperm.xlu0 %15, %v12
    %v17 = vpop.permute.xlu0 %16
    %v19 = vlaneseq
    %v20 = vshrl.u32 %v19, 7
    %v21 = vsub.s32 0, %v20
    %v22 = vrot.slane %v13, %v21
    %v23 = vmul.f32 %v17, %v22
    %v24 = vlaneseq
    %v25 = vshrl.u32 %v24, 7
    %v26 = vsub.s32 1, %v25
    %v27 = vrot.slane %v13, %v26
    %v28 = vadd.f32 %v23, %v27
    %v29 = vand.u32 2147483647, %v28
    %vm30 = vcmp.le.f32.partialorder %v29, 0.7853982
    %vm31 = vcmp.lt.s32.totalorder %v28, 0
    %v32 = vand.u32 %v28, 2139095040
    %v33 = vshrl.u32 %v32, 23
    %v34 = vsub.s32 %v33, 127
    %v35 = vand.u32 2147483647, %v28
    %v36 = vand.u32 %v35, 8388607
    %v37 = vor.u32 %v36, 8388608
    %v38 = vsub.s32 0, %v37
    %v39 = vadd.s32 %v34, 1
    %vm40 = vcmp.gt.s32.totalorder %v39, 0
    %v41 = vsel %vm40, %v39, 0
    %v42 = vshrl.u32 %v41, 5
    %v43 = vand.u32 %v41, 31
    %v44 = vsub.s32 32, %v43
    %v45 = vshrl.u32 683565275, %v44
    %v46 = vshll.u32 683565275, %v43
    %v47 = vshrl.u32 2475754826, %v44
    %v48 = vor.u32 %v46, %v47
    %v49 = vshll.u32 2475754826, %v43
    %v50 = vshrl.u32 2131351028, %v44
    %v51 = vor.u32 %v49, %v50
    %v52 = vshll.u32 2131351028, %v43
    %v53 = vshrl.u32 2102212464, %v44
    %v54 = vor.u32 %v52, %v53
    %v55 = vshll.u32 2102212464, %v43
    %v56 = vshrl.u32 920167782, %v44
    %v57 = vor.u32 %v55, %v56
    %v58 = vshll.u32 920167782, %v43
    %v59 = vshrl.u32 1326507024, %v44
    %v60 = vor.u32 %v58, %v59
    %vm61 = vcmp.lt.s32.totalorder %v42, 1
    %vm62 = vcmp.lt.s32.totalorder %v42, 2
    %vm63 = vcmp.lt.s32.totalorder %v42, 3
    %vm64 = vcmp.lt.s32.totalorder %v42, 4
    %v65 = vsel %vm61, %v45, %v48
    %v66 = vsel %vm64, %v54, 2102212464
    %v67 = vsel %vm63, %v51, %v66
    %v68 = vsel %vm62, %v65, %v67
    %v69 = vsel %vm61, %v48, %v51
    %v70 = vsel %vm64, %v57, 920167782
    %v71 = vsel %vm63, %v54, %v70
    %v72 = vsel %vm62, %v69, %v71
    %v73 = vsel %vm61, %v51, %v54
    %v74 = vsel %vm64, %v60, 1326507024
    %v75 = vsel %vm63, %v57, %v74
    %v76 = vsel %vm62, %v73, %v75
    %v77 = vshll.u32 %v37, 8
    %v78 = vmul.u32.u64.compose %v77, %v76
    %v79 = vextract.low.u32 %v78
    %v80 = vextract.high.u32 %v78
    %v81 = vmul.u32.u64.compose %v77, %v72
    %v82 = vextract.low.u32 %v81
    %v83 = vextract.high.u32 %v81
    %v84 = vmul.u32 %v77, %v68
    %v85 = vadd.s32 %v80, %v82
    %vm86 = vc.u32 %v80, %v82
    %v87 = vadd.s32 %v83, 1
    %v88 = vsel %vm86, %v87, %v83
    %v89 = vadd.s32 %v84, %v88
    %v90 = vadd.s32 %v89, 536870912
    %v91 = vshrl.u32 %v90, 30
    %v92 = vshll.u32 %v91, 30
    %v93 = vsub.s32 %v89, %v92
    %vm94 = vcmp.lt.s32.totalorder %v93, 0
    %v95 = vsub.s32 0, %v93
    %v96 = vsel %vm94, %v95, %v93
    %v97 = vclz %v96
    %v98 = vsub.s32 %v97, 2
    %vm99 = vcmp.gt.s32.totalorder 0, %v98
    %v100 = vsel %vm99, 0, %v98
    %v101 = vsub.s32 32, %v100
    %v102 = vshll.u32 %v93, %v100
    %v103 = vshrl.u32 %v85, %v101
    %v104 = vor.u32 %v102, %v103
    %v105 = vsub.s32 4294967266, %v100
    %v106 = vadd.s32 %v105, 127
    %v107 = vshll.u32 %v106, 23
    %v108 = vor.u32 4788187, %v107
    %v109 = vand.u32 2147483647, %v108
    %v111 = vcvt.s32.f32 %v104
    %v112 = vmul.f32 %v111, %v109
    %v113 = vxor.u32 %v112, 2147483648
    %v114 = vsel %vm31, %v113, %v112
    %v115 = vsub.s32 4, %v91
    %v116 = vsel %vm31, %v115, %v91
    %v117 = vsel %vm30, %v28, %v114
    %v118 = vsel %vm30, 0, %v116
    %v119 = vcosq.f32.pop %v117
    %v120 = vsinq.f32.pop %v117
    %vm121 = vweird.f32 %v28
    %v122 = vadd.s32 %v118, 3
    %v123 = vand.u32 %v122, 3
    %vm124 = vcmp.lt.s32.totalorder %v123, 2
    %vm125 = vcmp.eq.s32.totalorder %v123, 0
    %v126 = vxor.u32 %v120, 2147483648
    %v127 = vsel %vm125, %v119, %v126
    %vm128 = vcmp.eq.s32.totalorder %v123, 2
    %v129 = vxor.u32 %v119, 2147483648
    %v130 = vsel %vm128, %v129, %v120
    %v131 = vsel %vm124, %v127, %v130
    %v132 = vsel %vm121, nan, %v131
    %133 = vst [vmem:[#allocation2] sm:$0xff] %v132
    // Predicated region
    $region10: #{temporal_encoding.1} parent=1 // pred_check
      _
    $region11: #{temporal_encoding.1} parent=1 // pred_check_branch
      %135 = sbr.rel (0) target = $region13
    $region12: #{temporal_encoding.1} parent=1 // pred_region
      %s137 = ssub.s32 128, 128
      %138 = vsyncadd [#allocation3], %s137
      %s140 = sshll.u32 [#allocation2], 4
      %s141 = int_to_ptr.vmem [resolvable:$true] %s140
      %143 = dma.vmem_to_hbm [thread:$0]  %s141, 128, %s2, [#allocation3]
    $region13: #{temporal_encoding.1} parent=1 // pred_fallthru
      _
    // Predicated region
    $region14: #{temporal_encoding.1} parent=1 // pred_check
      _
    $region15: #{temporal_encoding.1} parent=1 // pred_check_branch
      %145 = sbr.rel (0) target = $region17
    $region16: #{temporal_encoding.1} parent=1 // pred_region
      %146 = dma.done [#allocation3], 128
    $region17: #{temporal_encoding.1} parent=1 // pred_fallthru
      _
    %147 = vsyncpa [#allocation3], 1

</llo_original>
